<compile_context>
chip_gen: v7x
topology: tpu7x:2x2x1
jax: 0.10.0
libtpu: 0.0.40
codegen_flags: <defaults>
</compile_context>

<pallas_src>
import jax
import jax.numpy as jnp
from jax import lax
from jax.experimental import pallas as pl
from jax.experimental.pallas import tpu as pltpu


# Contract x's feature dim (axis 1) with W's "in" dim (axis 1): x @ W.T
# without materializing a transpose inside the kernel.
_DN = (((1,), (1,)), ((), ()))


def _matrix_kernel(x_ref, w1_ref, w2_ref, w3_ref, o_ref):
    x = x_ref[...]
    h = jnp.tanh(lax.dot_general(x, w1_ref[...], _DN,
                                 preferred_element_type=jnp.float32))
    h = jnp.tanh(lax.dot_general(h, w2_ref[...], _DN,
                                 preferred_element_type=jnp.float32))
    out = lax.dot_general(h, w3_ref[...], _DN,
                          preferred_element_type=jnp.float32)
    o_ref[...] = out.astype(o_ref.dtype)


def _round_up(x, m):
    return (x + m - 1) // m * m


def matrix_forward(x, w1, w2, w3, *, tm=512):
    """Pallas equivalent of Matrix.forward: L3(tanh(L2(tanh(L1(x)))))."""
    m, n = x.shape
    assert w1.shape == (n, n) and w2.shape == (n, n) and w3.shape == (n, n)

    # Lane-dense feature dim (multiple of 128); sublane-aligned batch tiles.
    n_pad = _round_up(n, 128)
    tm_eff = min(tm, _round_up(m, 8))          # tile rows (multiple of 8)
    m_pad = _round_up(m, tm_eff)

    x_p = jnp.pad(x, ((0, m_pad - m), (0, n_pad - n)))
    w1_p = jnp.pad(w1, ((0, n_pad - n), (0, n_pad - n)))
    w2_p = jnp.pad(w2, ((0, n_pad - n), (0, n_pad - n)))
    w3_p = jnp.pad(w3, ((0, n_pad - n), (0, n_pad - n)))

    grid = (m_pad // tm_eff,)

    out_p = pl.pallas_call(
        _matrix_kernel,
        out_shape=jax.ShapeDtypeStruct((m_pad, n_pad), x.dtype),
        grid_spec=pltpu.PrefetchScalarGridSpec(
            num_scalar_prefetch=0,
            grid=grid,
            in_specs=[
                # x: tiled over batch, pipelined across grid steps.
                pl.BlockSpec((tm_eff, n_pad), lambda i: (i, 0)),
                # Weights: constant index map -> stay VMEM-resident.
                pl.BlockSpec((n_pad, n_pad), lambda i: (0, 0)),
                pl.BlockSpec((n_pad, n_pad), lambda i: (0, 0)),
                pl.BlockSpec((n_pad, n_pad), lambda i: (0, 0)),
            ],
            out_specs=pl.BlockSpec((tm_eff, n_pad), lambda i: (i, 0)),
        ),
        compiler_params=pltpu.CompilerParams(
            dimension_semantics=("parallel",),
        ),
    )(x_p, w1_p, w2_p, w3_p)

    return out_p[:m, :n]


def _reference_forward(x, w1, w2, w3):
    h = jnp.tanh(x @ w1.T)
    h = jnp.tanh(h @ w2.T)
    return h @ w3.T


if __name__ == "__main__":
    n = 32        # feature dim of the square Linear layers
    batch = 256   # rows fed through Matrix (small, but enough for a real grid)

    key = jax.random.PRNGKey(0)
    kx, k1, k2, k3 = jax.random.split(key, 4)

    # Deterministic param init (mimics nn.Linear uniform(-1/sqrt(n), 1/sqrt(n)))
    bound = 1.0 / jnp.sqrt(jnp.float32(n))
    x = jax.random.normal(kx, (batch, n), dtype=jnp.float32)
    w1 = jax.random.uniform(k1, (n, n), jnp.float32, -bound, bound)
    w2 = jax.random.uniform(k2, (n, n), jnp.float32, -bound, bound)
    w3 = jax.random.uniform(k3, (n, n), jnp.float32, -bound, bound)

    out = matrix_forward(x, w1, w2, w3, tm=128)   # grid of 2 steps at batch=256
    out = jax.block_until_ready(out)

    ref = _reference_forward(x, w1, w2, w3)
    assert out.shape == (batch, n)
    assert jnp.allclose(out, ref, atol=1e-5, rtol=1e-5), "mismatch vs reference"

    print("KERNEL_OK")
</pallas_src>

<mosaic_0001>
module attributes {stable_mosaic.version = 11 : i64} {
  func.func @_matrix_kernel(%arg0: i32, %arg1: memref<128x128xf32, #tpu.memory_space<vmem>>, %arg2: memref<128x128xf32, #tpu.memory_space<vmem>>, %arg3: memref<128x128xf32, #tpu.memory_space<vmem>>, %arg4: memref<128x128xf32, #tpu.memory_space<vmem>>, %arg5: memref<128x128xf32, #tpu.memory_space<vmem>>) attributes {dimension_semantics = [#tpu.dimension_semantics<parallel>], iteration_bounds = array<i64: 2>, scalar_prefetch = 0 : i64, scratch_operands = 0 : i64, tpu.core_type = #tpu.core_type<tc>, window_params = [{transform_indices = @transform_0, window_bounds = array<i64: 128, 128>}, {pipeline_mode = #tpu.pipeline_mode<synchronous>, transform_indices = @transform_1, window_bounds = array<i64: 128, 128>}, {pipeline_mode = #tpu.pipeline_mode<synchronous>, transform_indices = @transform_2, window_bounds = array<i64: 128, 128>}, {pipeline_mode = #tpu.pipeline_mode<synchronous>, transform_indices = @transform_3, window_bounds = array<i64: 128, 128>}, {transform_indices = @transform_4, window_bounds = array<i64: 128, 128>}]} {
    %c0 = arith.constant 0 : index
    %c0_0 = arith.constant 0 : index
    %0 = vector.load %arg1[%c0, %c0_0] : memref<128x128xf32, #tpu.memory_space<vmem>>, vector<128x128xf32>
    %c0_1 = arith.constant 0 : index
    %c0_2 = arith.constant 0 : index
    %1 = vector.load %arg2[%c0_1, %c0_2] : memref<128x128xf32, #tpu.memory_space<vmem>>, vector<128x128xf32>
    %cst = arith.constant dense<0.000000e+00> : vector<128x128xf32>
    %2 = tpu.matmul %0, %1, %cst {dimension_numbers = #tpu.dot_dimension_numbers<[1], [1], [0], [0], [0, 0, 1, 0], [], []>} : vector<128x128xf32>, vector<128x128xf32>, vector<128x128xf32> -> vector<128x128xf32>
    %3 = math.tanh %2 : vector<128x128xf32>
    %c0_3 = arith.constant 0 : index
    %c0_4 = arith.constant 0 : index
    %4 = vector.load %arg3[%c0_3, %c0_4] : memref<128x128xf32, #tpu.memory_space<vmem>>, vector<128x128xf32>
    %cst_5 = arith.constant dense<0.000000e+00> : vector<128x128xf32>
    %5 = tpu.matmul %3, %4, %cst_5 {dimension_numbers = #tpu.dot_dimension_numbers<[1], [1], [0], [0], [0, 0, 1, 0], [], []>} : vector<128x128xf32>, vector<128x128xf32>, vector<128x128xf32> -> vector<128x128xf32>
    %6 = math.tanh %5 : vector<128x128xf32>
    %c0_6 = arith.constant 0 : index
    %c0_7 = arith.constant 0 : index
    %7 = vector.load %arg4[%c0_6, %c0_7] : memref<128x128xf32, #tpu.memory_space<vmem>>, vector<128x128xf32>
    %cst_8 = arith.constant dense<0.000000e+00> : vector<128x128xf32>
    %8 = tpu.matmul %6, %7, %cst_8 {dimension_numbers = #tpu.dot_dimension_numbers<[1], [1], [0], [0], [0, 0, 1, 0], [], []>} : vector<128x128xf32>, vector<128x128xf32>, vector<128x128xf32> -> vector<128x128xf32>
    %c0_9 = arith.constant 0 : index
    %c0_10 = arith.constant 0 : index
    %9 = vector.load %arg5[%c0_9, %c0_10] : memref<128x128xf32, #tpu.memory_space<vmem>>, vector<128x128xf32>
    tpu.vector_store %arg5[%c0_9, %c0_10], %8 {strides = array<i32>} : memref<128x128xf32, #tpu.memory_space<vmem>>, vector<128x128xf32>,
    return
  }
  func.func @transform_0(%arg0: i32) -> (i32, i32) {
    %c0_i32 = arith.constant 0 : i32
    %c0_i32_0 = arith.constant 0 : i32
    return %arg0, %c0_i32 : i32, i32
  }
  func.func @transform_1(%arg0: i32) -> (i32, i32) {
    %c0_i32 = arith.constant 0 : i32
    %c0_i32_0 = arith.constant 0 : i32
    %c0_i32_1 = arith.constant 0 : i32
    return %c0_i32, %c0_i32_0 : i32, i32
  }
  func.func @transform_2(%arg0: i32) -> (i32, i32) {
    %c0_i32 = arith.constant 0 : i32
    %c0_i32_0 = arith.constant 0 : i32
    %c0_i32_1 = arith.constant 0 : i32
    return %c0_i32, %c0_i32_0 : i32, i32
  }
  func.func @transform_3(%arg0: i32) -> (i32, i32) {
    %c0_i32 = arith.constant 0 : i32
    %c0_i32_0 = arith.constant 0 : i32
    %c0_i32_1 = arith.constant 0 : i32
    return %c0_i32, %c0_i32_0 : i32, i32
  }
  func.func @transform_4(%arg0: i32) -> (i32, i32) {
    %c0_i32 = arith.constant 0 : i32
    %c0_i32_0 = arith.constant 0 : i32
    return %arg0, %c0_i32 : i32, i32
  }
}

</mosaic_0001>

<llo_original>
// kernel: tpu_custom_call.1
$region0: #{tpu_custom_call.1}
  #allocation0 [shape = 'u32[]', space=smem, size = 0x4, offset = 0x4, fixed_abs, tag = 'smem constant byte address 0x4 - core index']
  #allocation1 [shape = 'u32[144,128]{1,0:T(1,128)}', space=vmem, size = 0x12000, scoped, tag = 'internal scratch']
  %s0 = inlined_call_operand.hbm [shape: f32[256,128], index: 0, kind: input, shape index: {}]
  %s1 = inlined_call_operand.hbm [shape: f32[128,128], index: 1, kind: input, shape index: {}]
  %s2 = inlined_call_operand.hbm [shape: f32[128,128], index: 2, kind: input, shape index: {}]
  %s3 = inlined_call_operand.hbm [shape: f32[128,128], index: 3, kind: input, shape index: {}]
  %s4 = inlined_call_operand.hbm [shape: f32[256,128], index: 4, kind: output, shape index: {}]
  %s5 = sld [smem:[#allocation0]]
  $region65: #{tpu_custom_call.1} parent=0
    _
  %s7 = ssub.s32 1, %s5
  %s8 = scalar_select 0, %s7, %s5
  $region1: #{tpu_custom_call.1} parent=0
    #allocation2 [shape = 'u8[131072]{0}', space=vmem, size = 0x20000, scoped, tag = 'input window, operand 0']
    #allocation3 [shape = 's32[2]{0}', space=sflag, size = 0x8, scoped, tag = 'scoped memory for tpu_custom_call.1']
    #allocation4 [shape = 's32[2]{0}', space=sflag, size = 0x8, scoped, tag = 'scoped memory for tpu_custom_call.1']
    #allocation5 [shape = 'u8[65536]{0}', space=vmem, size = 0x10000, scoped, tag = 'input window, operand 1, single buffered']
    #allocation6 [shape = 's32[1]{0}', space=sflag, size = 0x4, scoped, tag = 'scoped memory for tpu_custom_call.1']
    #allocation7 [shape = 'u8[65536]{0}', space=vmem, size = 0x10000, scoped, tag = 'input window, operand 2, single buffered']
    #allocation8 [shape = 'u8[65536]{0}', space=vmem, size = 0x10000, scoped, tag = 'input window, operand 3, single buffered']
    #allocation9 [shape = 's32[1]{0}', space=sflag, size = 0x4, scoped, tag = 'scoped memory for tpu_custom_call.1']
    #allocation10 [shape = 'u8[131072]{0}', space=vmem, size = 0x20000, scoped, tag = 'output window, operand 0']
    %9 = vsyncpa [#allocation3], 0
    %s10 = scalar_lea.sflag [#allocation3], 1
    %11 = vsyncpa %s10, 0
    %12 = vsyncpa [#allocation6], 0
    %13 = vsyncpa [#allocation9], 0
    %14 = vsyncpa [#allocation4], 0
    %s15 = scalar_lea.sflag [#allocation4], 1
    %16 = vsyncpa %s15, 0
    loop: start=0, step=1, limit=4
    $region2: #{tpu_custom_call.1} parent=1 // loop_pre_header
      _
    $region3: #{tpu_custom_call.1} parent=1 // loop_header
      %s18 = sphi 0, %s22
      %p19 = scmp.ge.s32.totalorder %s18, 4
      %s28 = sphi 0, %s30
      %s31 = sphi 0, %s28
      %s32 = sphi 0, %s31
      %s48 = sphi 0, %s32
      %s52 = sphi 0, %s52
      %s54 = sphi 0, %s52
      %s55 = sphi 0, %s54
      %s69 = sphi 0, %s55
      %s73 = sphi 0, %s73
      %s75 = sphi 0, %s73
      %s76 = sphi 0, %s75
      %s90 = sphi 0, %s76
      %s94 = sphi 0, %s94
      %s96 = sphi 0, %s94
      %s97 = sphi 0, %s96
      %s111 = sphi 0, %s97
      %s117 = sphi 0, %s119
      %s120 = sphi 0, %s117
      %s121 = sphi 0, %s120
      %s137 = sphi 0, %s121
    $region4: #{tpu_custom_call.1} parent=1 // loop_header_branch
      %21 = sbr.rel (%p19) target = $region8
    $region5: #{tpu_custom_call.1} parent=1 // loop_body
      %s23 = ssub.s32 %s18, 1
      %s24 = ssub.s32 %s18, 2
      %s25 = sadd.s32 %s18, 1
      %s26 = ssub.s32 %s18, %s25
      %p27 = scmp.eq.s32.totalorder %s26, 0
      %s29 = sadd.s32 %s28, 1
      %s30 = scalar_select %p27, %s28, %s29
      %p33 = pneg %p27
      %p34 = scmp.eq.s32.totalorder %s18, 1
      %p35 = por %p33, %p34
      %p36 = scmp.ne.s32.totalorder %s28, %s31
      %p37 = scmp.eq.s32.totalorder %s18, 0
      %p38 = por %p36, %p37
      %p39 = scmp.ne.s32.totalorder %s28, %s31
      %p40 = scmp.eq.s32.totalorder %s23, 1
      %p41 = por %p39, %p40
      %p42 = scmp.ne.s32.totalorder %s31, %s32
      %p43 = scmp.eq.s32.totalorder %s23, 0
      %p44 = por %p42, %p43
      %p45 = scmp.ne.s32.totalorder %s31, %s32
      %p46 = scmp.eq.s32.totalorder %s24, 1
      %p47 = por %p45, %p46
      %p49 = scmp.ne.s32.totalorder %s32, %s48
      %p50 = scmp.eq.s32.totalorder %s24, 0
      %p51 = por %p49, %p50
      %s53 = sadd.s32 %s52, 1
      %p56 = scmp.eq.s32.totalorder %s18, 1
      %p57 = scmp.ne.s32.totalorder %s52, %s54
      %p58 = scmp.eq.s32.totalorder %s18, 0
      %p59 = por %p57, %p58
      %p60 = scmp.ne.s32.totalorder %s52, %s54
      %p61 = scmp.eq.s32.totalorder %s23, 1
      %p62 = por %p60, %p61
      %p63 = scmp.ne.s32.totalorder %s54, %s55
      %p64 = scmp.eq.s32.totalorder %s23, 0
      %p65 = por %p63, %p64
      %p66 = scmp.ne.s32.totalorder %s54, %s55
      %p67 = scmp.eq.s32.totalorder %s24, 1
      %p68 = por %p66, %p67
      %p70 = scmp.ne.s32.totalorder %s55, %s69
      %p71 = scmp.eq.s32.totalorder %s24, 0
      %p72 = por %p70, %p71
      %s74 = sadd.s32 %s73, 1
      %p77 = scmp.eq.s32.totalorder %s18, 1
      %p78 = scmp.ne.s32.totalorder %s73, %s75
      %p79 = scmp.eq.s32.totalorder %s18, 0
      %p80 = por %p78, %p79
      %p81 = scmp.ne.s32.totalorder %s73, %s75
      %p82 = scmp.eq.s32.totalorder %s23, 1
      %p83 = por %p81, %p82
      %p84 = scmp.ne.s32.totalorder %s75, %s76
      %p85 = scmp.eq.s32.totalorder %s23, 0
      %p86 = por %p84, %p85
      %p87 = scmp.ne.s32.totalorder %s75, %s76
      %p88 = scmp.eq.s32.totalorder %s24, 1
      %p89 = por %p87, %p88
      %p91 = scmp.ne.s32.totalorder %s76, %s90
      %p92 = scmp.eq.s32.totalorder %s24, 0
      %p93 = por %p91, %p92
      %s95 = sadd.s32 %s94, 1
      %p98 = scmp.eq.s32.totalorder %s18, 1
      %p99 = scmp.ne.s32.totalorder %s94, %s96
      %p100 = scmp.eq.s32.totalorder %s18, 0
      %p101 = por %p99, %p100
      %p102 = scmp.ne.s32.totalorder %s94, %s96
      %p103 = scmp.eq.s32.totalorder %s23, 1
      %p104 = por %p102, %p103
      %p105 = scmp.ne.s32.totalorder %s96, %s97
      %p106 = scmp.eq.s32.totalorder %s23, 0
      %p107 = por %p105, %p106
      %p108 = scmp.ne.s32.totalorder %s96, %s97
      %p109 = scmp.eq.s32.totalorder %s24, 1
      %p110 = por %p108, %p109
      %p112 = scmp.ne.s32.totalorder %s97, %s111
      %p113 = scmp.eq.s32.totalorder %s24, 0
      %p114 = por %p112, %p113
      %s115 = ssub.s32 %s18, %s25
      %p116 = scmp.eq.s32.totalorder %s115, 0
      %s118 = sadd.s32 %s117, 1
      %s119 = scalar_select %p116, %s117, %s118
      %p122 = pneg %p116
      %p123 = scmp.eq.s32.totalorder %s18, 1
      %p124 = por %p122, %p123
      %p125 = scmp.ne.s32.totalorder %s117, %s120
      %p126 = scmp.eq.s32.totalorder %s18, 0
      %p127 = por %p125, %p126
      %p128 = scmp.ne.s32.totalorder %s117, %s120
      %p129 = scmp.eq.s32.totalorder %s23, 1
      %p130 = por %p128, %p129
      %p131 = scmp.ne.s32.totalorder %s120, %s121
      %p132 = scmp.eq.s32.totalorder %s23, 0
      %p133 = por %p131, %p132
      %p134 = scmp.ne.s32.totalorder %s120, %s121
      %p135 = scmp.eq.s32.totalorder %s24, 1
      %p136 = por %p134, %p135
      %p138 = scmp.ne.s32.totalorder %s121, %s137
      %p139 = scmp.eq.s32.totalorder %s24, 0
      %p140 = por %p138, %p139
      %p141 = scmp.le.s32.totalorder 1, %s18
      %p142 = scmp.lt.s32.totalorder %s18, 3
      %p143 = pnand %p141, %p142
      %p144 = pneg %p143
      // Predicated region
      $region9: #{tpu_custom_call.1} parent=5 // pred_check
        _
      $region10: #{tpu_custom_call.1} parent=5 // pred_check_branch
        %146 = sbr.rel (%p143) target = $region12
      $region11: #{tpu_custom_call.1} parent=5 // pred_region
        %s147 = ssub.s32 %s18, 1
        // Predicated region
        $region13: #{tpu_custom_call.1} parent=11 // pred_check
          %p148 = pneg %p65
        $region14: #{tpu_custom_call.1} parent=11 // pred_check_branch
          %150 = sbr.rel (%p148) target = $region16
        $region15: #{tpu_custom_call.1} parent=11 // pred_region
          %s152 = ssub.s32 2048, 2048
          %153 = vsyncadd [#allocation6], %s152
          %s154 = sshll.u32 [#allocation5], 4
          %s155 = int_to_ptr.vmem [resolvable:$true] %s154
          %160 = dma.hbm_to_vmem [thread:$0]  %s1, 2048, %s155, [#allocation6], 128, 128, 8
        $region16: #{tpu_custom_call.1} parent=11 // pred_fallthru
          _
        // Predicated region
        $region17: #{tpu_custom_call.1} parent=11 // pred_check
          %p161 = pneg %p86
        $region18: #{tpu_custom_call.1} parent=11 // pred_check_branch
          %163 = sbr.rel (%p161) target = $region20
        $region19: #{tpu_custom_call.1} parent=11 // pred_region
          %s165 = ssub.s32 2048, 2048
          %166 = vsyncadd [#allocation6], %s165
          %s167 = sshll.u32 [#allocation7], 4
          %s168 = int_to_ptr.vmem [resolvable:$true] %s167
          %173 = dma.hbm_to_vmem [thread:$0]  %s2, 2048, %s168, [#allocation6], 128, 128, 8
        $region20: #{tpu_custom_call.1} parent=11 // pred_fallthru
          _
        // Predicated region
        $region21: #{tpu_custom_call.1} parent=11 // pred_check
          %p174 = pneg %p107
        $region22: #{tpu_custom_call.1} parent=11 // pred_check_branch
          %176 = sbr.rel (%p174) target = $region24
        $region23: #{tpu_custom_call.1} parent=11 // pred_region
          %s178 = ssub.s32 2048, 2048
          %179 = vsyncadd [#allocation9], %s178
          %s180 = sshll.u32 [#allocation8], 4
          %s181 = int_to_ptr.vmem [resolvable:$true] %s180
          %186 = dma.hbm_to_vmem [thread:$0]  %s3, 2048, %s181, [#allocation9], 128, 128, 8
        $region24: #{tpu_custom_call.1} parent=11 // pred_fallthru
          _
      $region12: #{tpu_custom_call.1} parent=5 // pred_fallthru
        _
      %p187 = scmp.lt.s32.totalorder %s18, 2
      // Predicated region
      $region25: #{tpu_custom_call.1} parent=5 // pred_check
        %p188 = pneg %p187
      $region26: #{tpu_custom_call.1} parent=5 // pred_check_branch
        %190 = sbr.rel (%p188) target = $region28
      $region27: #{tpu_custom_call.1} parent=5 // pred_region
        // Predicated region
        $region29: #{tpu_custom_call.1} parent=27 // pred_check
          %p191 = pneg %p38
        $region30: #{tpu_custom_call.1} parent=27 // pred_check_branch
          %193 = sbr.rel (%p191) target = $region32
        $region31: #{tpu_custom_call.1} parent=27 // pred_region
          %s194 = sand.u32 %s28, 1
          %s195 = scalar_lea.sflag [#allocation3], %s194
          %s196 = sand.u32 %s28, 1
          %s197 = smul.addr %s196, 128
          %s198 = scalar_lea.vmem [#allocation2], %s197
          %s199 = smul.u32 16, %s18
          %s201 = ssub.s32 2048, 2048
          %202 = vsyncadd %s195, %s201
          %s203 = smul.addr %s199, 128
          %s204 = scalar_lea.hbm %s0, %s203
          %s205 = sshll.u32 %s198, 4
          %s206 = int_to_ptr.vmem [resolvable:$true] %s205
          %211 = dma.hbm_to_vmem [thread:$0]  %s204, 2048, %s206, %s195, 128, 128, 8
        $region32: #{tpu_custom_call.1} parent=27 // pred_fallthru
          _
      $region28: #{tpu_custom_call.1} parent=5 // pred_fallthru
        _
      %p212 = scmp.le.s32.totalorder 1, %s18
      %p213 = scmp.lt.s32.totalorder %s18, 3
      %p214 = pnand %p212, %p213
      %p215 = pneg %p214
      // Predicated region
      $region33: #{tpu_custom_call.1} parent=5 // pred_check
        _
      $region34: #{tpu_custom_call.1} parent=5 // pred_check_branch
        %217 = sbr.rel (%p214) target = $region36
      $region35: #{tpu_custom_call.1} parent=5 // pred_region
        %s218 = ssub.s32 %s18, 1
        %s219 = sand.u32 %s31, 1
        %s220 = scalar_lea.sflag [#allocation3], %s219
        %s221 = sand.u32 %s31, 1
        %s222 = smul.addr %s221, 128
        %s223 = scalar_lea.vmem [#allocation2], %s222
        // Predicated region
        $region37: #{tpu_custom_call.1} parent=35 // pred_check
          %p224 = pneg %p44
        $region38: #{tpu_custom_call.1} parent=35 // pred_check_branch
          %226 = sbr.rel (%p224) target = $region40
        $region39: #{tpu_custom_call.1} parent=35 // pred_region
          %227 = dma.done %s220, 2048
        $region40: #{tpu_custom_call.1} parent=35 // pred_fallthru
          _
        // Predicated region
        $region41: #{tpu_custom_call.1} parent=35 // pred_check
          %p228 = pneg %p65
        $region42: #{tpu_custom_call.1} parent=35 // pred_check_branch
          %230 = sbr.rel (%p228) target = $region44
        $region43: #{tpu_custom_call.1} parent=35 // pred_region
          %231 = dma.done [#allocation6], 2048
        $region44: #{tpu_custom_call.1} parent=35 // pred_fallthru
          _
        // Predicated region
        $region45: #{tpu_custom_call.1} parent=35 // pred_check
          %p232 = pneg %p86
        $region46: #{tpu_custom_call.1} parent=35 // pred_check_branch
          %234 = sbr.rel (%p232) target = $region48
        $region47: #{tpu_custom_call.1} parent=35 // pred_region
          %235 = dma.done [#allocation6], 2048
        $region48: #{tpu_custom_call.1} parent=35 // pred_fallthru
          _
        // Predicated region
        $region49: #{tpu_custom_call.1} parent=35 // pred_check
          %p236 = pneg %p107
        $region50: #{tpu_custom_call.1} parent=35 // pred_check_branch
          %238 = sbr.rel (%p236) target = $region52
        $region51: #{tpu_custom_call.1} parent=35 // pred_region
          %239 = dma.done [#allocation9], 2048
        $region52: #{tpu_custom_call.1} parent=35 // pred_fallthru
          _
        %s240 = sand.u32 %s31, 1
        %s241 = scalar_lea.sflag [#allocation3], %s240
        %s242 = sand.u32 %s31, 1
        %s243 = smul.addr %s242, 128
        %s244 = scalar_lea.vmem [#allocation2], %s243
        %p245 = pneg %p44
        %p246 = pneg %p41
        %p247 = pneg %p65
        %p248 = pneg %p62
        %p249 = pneg %p86
        %p250 = pneg %p83
        %p251 = pneg %p107
        %p252 = pneg %p104
        %p253 = pneg %p133
        %p254 = pneg %p130
        %s255 = sand.u32 %s120, 1
        %s256 = scalar_lea.sflag [#allocation4], %s255
        %s257 = sand.u32 %s120, 1
        %s258 = smul.addr %s257, 128
        %s259 = scalar_lea.vmem [#allocation10], %s258
        %s260 = smul.u32 16, %s23
        %s261 = smul.u32 16, %s23
        %v262 = vld [vmem:[%s223] sm:$0xff]
        %v263 = vld [vmem:[%s223 + $0x8] sm:$0xff]
        %v264 = vld [vmem:[%s223 + $0x10] sm:$0xff]
        %v265 = vld [vmem:[%s223 + $0x18] sm:$0xff]
        %v266 = vld [vmem:[%s223 + $0x20] sm:$0xff]
        %v267 = vld [vmem:[%s223 + $0x28] sm:$0xff]
        %v268 = vld [vmem:[%s223 + $0x30] sm:$0xff]
        %v269 = vld [vmem:[%s223 + $0x38] sm:$0xff]
        %v270 = vld [vmem:[%s223 + $0x40] sm:$0xff]
        %v271 = vld [vmem:[%s223 + $0x48] sm:$0xff]
        %v272 = vld [vmem:[%s223 + $0x50] sm:$0xff]
        %v273 = vld [vmem:[%s223 + $0x58] sm:$0xff]
        %v274 = vld [vmem:[%s223 + $0x60] sm:$0xff]
        %v275 = vld [vmem:[%s223 + $0x68] sm:$0xff]
        %v276 = vld [vmem:[%s223 + $0x70] sm:$0xff]
        %v277 = vld [vmem:[%s223 + $0x78] sm:$0xff]
        %v278 = vld [vmem:[#allocation5] sm:$0xff]
        %v279 = vld [vmem:[#allocation5 + $0x8] sm:$0xff]
        %v280 = vld [vmem:[#allocation5 + $0x10] sm:$0xff]
        %v281 = vld [vmem:[#allocation5 + $0x18] sm:$0xff]
        %v282 = vld [vmem:[#allocation5 + $0x20] sm:$0xff]
        %v283 = vld [vmem:[#allocation5 + $0x28] sm:$0xff]
        %v284 = vld [vmem:[#allocation5 + $0x30] sm:$0xff]
        %v285 = vld [vmem:[#allocation5 + $0x38] sm:$0xff]
        %v286 = vld [vmem:[#allocation5 + $0x40] sm:$0xff]
        %v287 = vld [vmem:[#allocation5 + $0x48] sm:$0xff]
        %v288 = vld [vmem:[#allocation5 + $0x50] sm:$0xff]
        %v289 = vld [vmem:[#allocation5 + $0x58] sm:$0xff]
        %v290 = vld [vmem:[#allocation5 + $0x60] sm:$0xff]
        %v291 = vld [vmem:[#allocation5 + $0x68] sm:$0xff]
        %v292 = vld [vmem:[#allocation5 + $0x70] sm:$0xff]
        %v293 = vld [vmem:[#allocation5 + $0x78] sm:$0xff]
        %294 = vmatprep.subr.mxu0 0.0
        %295 = vmatpush1.xpose.msra.mxu0 %v278
        %296 = vmatprep.subr.mxu0 0.0
        %297 = vmatpush1.xpose.msra.mxu0 %v279
        %298 = vmatprep.subr.mxu0 0.0
        %299 = vmatpush1.xpose.msra.mxu0 %v280
        %300 = vmatprep.subr.mxu0 0.0
        %301 = vmatpush1.xpose.msra.mxu0 %v281
        %302 = vmatprep.subr.mxu0 0.0
        %303 = vmatpush1.xpose.msra.mxu0 %v282
        %304 = vmatprep.subr.mxu0 0.0
        %305 = vmatpush1.xpose.msra.mxu0 %v283
        %306 = vmatprep.subr.mxu0 0.0
        %307 = vmatpush1.xpose.msra.mxu0 %v284
        %308 = vmatprep.subr.mxu0 0.0
        %309 = vmatpush1.xpose.msra.mxu0 %v285
        %310 = vmatprep.subr.mxu0 0.0
        %311 = vmatpush1.xpose.msra.mxu0 %v286
        %312 = vmatprep.subr.mxu0 0.0
        %313 = vmatpush1.xpose.msra.mxu0 %v287
        %314 = vmatprep.subr.mxu0 0.0
        %315 = vmatpush1.xpose.msra.mxu0 %v288
        %316 = vmatprep.subr.mxu0 0.0
        %317 = vmatpush1.xpose.msra.mxu0 %v289
        %318 = vmatprep.subr.mxu0 0.0
        %319 = vmatpush1.xpose.msra.mxu0 %v290
        %320 = vmatprep.subr.mxu0 0.0
        %321 = vmatpush1.xpose.msra.mxu0 %v291
        %322 = vmatprep.subr.mxu0 0.0
        %323 = vmatpush1.xpose.msra.mxu0 %v292
        %324 = vmatprep.subr.mxu0 0.0
        %325 = vmatpush1.xpose.msra.mxu0 %v293
        %326 = vmatprep.subr.mxu0 0.0
        %327 = vmatpush1.xpose.msra.mxu0 0.0
        %328 = vmatprep.subr.mxu0 0.0
        %329 = vmatpush1.xpose.msra.mxu0 0.0
        %330 = vmatprep.subr.mxu0 0.0
        %331 = vmatpush1.xpose.msra.mxu0 0.0
        %332 = vmatprep.subr.mxu0 0.0
        %333 = vmatpush1.xpose.msra.mxu0 0.0
        %334 = vmatprep.subr.mxu0 0.0
        %335 = vmatpush1.xpose.msra.mxu0 0.0
        %336 = vmatprep.subr.mxu0 0.0
        %337 = vmatpush1.xpose.msra.mxu0 0.0
        %338 = vmatprep.subr.mxu0 0.0
        %339 = vmatpush1.xpose.msra.mxu0 0.0
        %340 = vmatprep.subr.mxu0 0.0
        %341 = vmatpush1.xpose.msra.mxu0 0.0
        %342 = vmatprep.subr.mxu0 0.0
        %343 = vmatpush1.xpose.msra.mxu0 0.0
        %344 = vmatprep.subr.mxu0 0.0
        %345 = vmatpush1.xpose.msra.mxu0 0.0
        %346 = vmatprep.subr.mxu0 0.0
        %347 = vmatpush1.xpose.msra.mxu0 0.0
        %348 = vmatprep.subr.mxu0 0.0
        %349 = vmatpush1.xpose.msra.mxu0 0.0
        %350 = vmatprep.subr.mxu0 0.0
        %351 = vmatpush1.xpose.msra.mxu0 0.0
        %352 = vmatprep.subr.mxu0 0.0
        %353 = vmatpush1.xpose.msra.mxu0 0.0
        %354 = vmatprep.subr.mxu0 0.0
        %355 = vmatpush1.xpose.msra.mxu0 0.0
        %356 = vmatprep.subr.mxu0 0.0
        %357 = vmatpush1.xpose.msra.mxu0 0.0
        %358 = vmatprep.mubr.f32.mxu0 0.0
        %359 = vmatmul.mubr.f32.gmra.mrb[0].mxu0 %v262
        %v360 = vpop.f32.mrb[0].mxu0
        %v361 = vadd.f32 0.0, %v360
        %v362 = vpop.f32.mrb[0].mxu0
        %363 = vmatprep.mubr.f32.mxu0 0.0
        %364 = vmatmul.mubr.f32.gmra.mrb[0].mxu0 %v263
        %v365 = vpop.f32.mrb[0].mxu0
        %v366 = vadd.f32 0.0, %v365
        %v367 = vpop.f32.mrb[0].mxu0
        %368 = vmatprep.mubr.f32.mxu0 0.0
        %369 = vmatmul.mubr.f32.gmra.mrb[0].mxu0 %v264
        %v370 = vpop.f32.mrb[0].mxu0
        %v371 = vadd.f32 0.0, %v370
        %v372 = vpop.f32.mrb[0].mxu0
        %373 = vmatprep.mubr.f32.mxu0 0.0
        %374 = vmatmul.mubr.f32.gmra.mrb[0].mxu0 %v265
        %v375 = vpop.f32.mrb[0].mxu0
        %v376 = vadd.f32 0.0, %v375
        %v377 = vpop.f32.mrb[0].mxu0
        %378 = vmatprep.mubr.f32.mxu0 0.0
        %379 = vmatmul.mubr.f32.gmra.mrb[0].mxu0 %v266
        %v380 = vpop.f32.mrb[0].mxu0
        %v381 = vadd.f32 0.0, %v380
        %v382 = vpop.f32.mrb[0].mxu0
        %383 = vmatprep.mubr.f32.mxu0 0.0
        %384 = vmatmul.mubr.f32.gmra.mrb[0].mxu0 %v267
        %v385 = vpop.f32.mrb[0].mxu0
        %v386 = vadd.f32 0.0, %v385
        %v387 = vpop.f32.mrb[0].mxu0
        %388 = vmatprep.mubr.f32.mxu0 0.0
        %389 = vmatmul.mubr.f32.gmra.mrb[0].mxu0 %v268
        %v390 = vpop.f32.mrb[0].mxu0
        %v391 = vadd.f32 0.0, %v390
        %v392 = vpop.f32.mrb[0].mxu0
        %393 = vmatprep.mubr.f32.mxu0 0.0
        %394 = vmatmul.mubr.f32.gmra.mrb[0].mxu0 %v269
        %v395 = vpop.f32.mrb[0].mxu0
        %v396 = vadd.f32 0.0, %v395
        %v397 = vpop.f32.mrb[0].mxu0
        %398 = vmatprep.mubr.f32.mxu0 0.0
        %399 = vmatmul.mubr.f32.gmra.mrb[0].mxu0 %v270
        %v400 = vpop.f32.mrb[0].mxu0
        %v401 = vadd.f32 0.0, %v400
        %v402 = vpop.f32.mrb[0].mxu0
        %403 = vmatprep.mubr.f32.mxu0 0.0
        %404 = vmatmul.mubr.f32.gmra.mrb[0].mxu0 %v271
        %v405 = vpop.f32.mrb[0].mxu0
        %v406 = vadd.f32 0.0, %v405
        %v407 = vpop.f32.mrb[0].mxu0
        %408 = vmatprep.mubr.f32.mxu0 0.0
        %409 = vmatmul.mubr.f32.gmra.mrb[0].mxu0 %v272
        %v410 = vpop.f32.mrb[0].mxu0
        %v411 = vadd.f32 0.0, %v410
        %v412 = vpop.f32.mrb[0].mxu0
        %413 = vmatprep.mubr.f32.mxu0 0.0
        %414 = vmatmul.mubr.f32.gmra.mrb[0].mxu0 %v273
        %v415 = vpop.f32.mrb[0].mxu0
        %v416 = vadd.f32 0.0, %v415
        %v417 = vpop.f32.mrb[0].mxu0
        %418 = vmatprep.mubr.f32.mxu0 0.0
        %419 = vmatmul.mubr.f32.gmra.mrb[0].mxu0 %v274
        %v420 = vpop.f32.mrb[0].mxu0
        %v421 = vadd.f32 0.0, %v420
        %v422 = vpop.f32.mrb[0].mxu0
        %423 = vmatprep.mubr.f32.mxu0 0.0
        %424 = vmatmul.mubr.f32.gmra.mrb[0].mxu0 %v275
        %v425 = vpop.f32.mrb[0].mxu0
        %v426 = vadd.f32 0.0, %v425
        %v427 = vpop.f32.mrb[0].mxu0
        %428 = vmatprep.mubr.f32.mxu0 0.0
        %429 = vmatmul.mubr.f32.gmra.mrb[0].mxu0 %v276
        %v430 = vpop.f32.mrb[0].mxu0
        %v431 = vadd.f32 0.0, %v430
        %v432 = vpop.f32.mrb[0].mxu0
        %433 = vmatprep.mubr.f32.mxu0 0.0
        %434 = vmatmul.mubr.f32.gmra.mrb[0].mxu0 %v277
        %v435 = vpop.f32.mrb[0].mxu0
        %v436 = vadd.f32 0.0, %v435
        %v437 = vpop.f32.mrb[0].mxu0
        %438 = vdwg.mxu0
        %v439 = vtanh.pop %v361
        %v440 = vtanh.pop %v366
        %v441 = vtanh.pop %v371
        %v442 = vtanh.pop %v376
        %v443 = vtanh.pop %v381
        %v444 = vtanh.pop %v386
        %v445 = vtanh.pop %v391
        %v446 = vtanh.pop %v396
        %v447 = vtanh.pop %v401
        %v448 = vtanh.pop %v406
        %v449 = vtanh.pop %v411
        %v450 = vtanh.pop %v416
        %v451 = vtanh.pop %v421
        %v452 = vtanh.pop %v426
        %v453 = vtanh.pop %v431
        %v454 = vtanh.pop %v436
        %v455 = vld [vmem:[#allocation7] sm:$0xff]
        %v456 = vld [vmem:[#allocation7 + $0x8] sm:$0xff]
        %v457 = vld [vmem:[#allocation7 + $0x10] sm:$0xff]
        %v458 = vld [vmem:[#allocation7 + $0x18] sm:$0xff]
        %v459 = vld [vmem:[#allocation7 + $0x20] sm:$0xff]
        %v460 = vld [vmem:[#allocation7 + $0x28] sm:$0xff]
        %v461 = vld [vmem:[#allocation7 + $0x30] sm:$0xff]
        %v462 = vld [vmem:[#allocation7 + $0x38] sm:$0xff]
        %v463 = vld [vmem:[#allocation7 + $0x40] sm:$0xff]
        %v464 = vld [vmem:[#allocation7 + $0x48] sm:$0xff]
        %v465 = vld [vmem:[#allocation7 + $0x50] sm:$0xff]
        %v466 = vld [vmem:[#allocation7 + $0x58] sm:$0xff]
        %v467 = vld [vmem:[#allocation7 + $0x60] sm:$0xff]
        %v468 = vld [vmem:[#allocation7 + $0x68] sm:$0xff]
        %v469 = vld [vmem:[#allocation7 + $0x70] sm:$0xff]
        %v470 = vld [vmem:[#allocation7 + $0x78] sm:$0xff]
        %471 = vmatprep.subr.mxu0 0.0
        %472 = vmatpush1.xpose.msra.mxu0 %v455
        %473 = vmatprep.subr.mxu0 0.0
        %474 = vmatpush1.xpose.msra.mxu0 %v456
        %475 = vmatprep.subr.mxu0 0.0
        %476 = vmatpush1.xpose.msra.mxu0 %v457
        %477 = vmatprep.subr.mxu0 0.0
        %478 = vmatpush1.xpose.msra.mxu0 %v458
        %479 = vmatprep.subr.mxu0 0.0
        %480 = vmatpush1.xpose.msra.mxu0 %v459
        %481 = vmatprep.subr.mxu0 0.0
        %482 = vmatpush1.xpose.msra.mxu0 %v460
        %483 = vmatprep.subr.mxu0 0.0
        %484 = vmatpush1.xpose.msra.mxu0 %v461
        %485 = vmatprep.subr.mxu0 0.0
        %486 = vmatpush1.xpose.msra.mxu0 %v462
        %487 = vmatprep.subr.mxu0 0.0
        %488 = vmatpush1.xpose.msra.mxu0 %v463
        %489 = vmatprep.subr.mxu0 0.0
        %490 = vmatpush1.xpose.msra.mxu0 %v464
        %491 = vmatprep.subr.mxu0 0.0
        %492 = vmatpush1.xpose.msra.mxu0 %v465
        %493 = vmatprep.subr.mxu0 0.0
        %494 = vmatpush1.xpose.msra.mxu0 %v466
        %495 = vmatprep.subr.mxu0 0.0
        %496 = vmatpush1.xpose.msra.mxu0 %v467
        %497 = vmatprep.subr.mxu0 0.0
        %498 = vmatpush1.xpose.msra.mxu0 %v468
        %499 = vmatprep.subr.mxu0 0.0
        %500 = vmatpush1.xpose.msra.mxu0 %v469
        %501 = vmatprep.subr.mxu0 0.0
        %502 = vmatpush1.xpose.msra.mxu0 %v470
        %503 = vmatprep.subr.mxu0 0.0
        %504 = vmatpush1.xpose.msra.mxu0 0.0
        %505 = vmatprep.subr.mxu0 0.0
        %506 = vmatpush1.xpose.msra.mxu0 0.0
        %507 = vmatprep.subr.mxu0 0.0
        %508 = vmatpush1.xpose.msra.mxu0 0.0
        %509 = vmatprep.subr.mxu0 0.0
        %510 = vmatpush1.xpose.msra.mxu0 0.0
        %511 = vmatprep.subr.mxu0 0.0
        %512 = vmatpush1.xpose.msra.mxu0 0.0
        %513 = vmatprep.subr.mxu0 0.0
        %514 = vmatpush1.xpose.msra.mxu0 0.0
        %515 = vmatprep.subr.mxu0 0.0
        %516 = vmatpush1.xpose.msra.mxu0 0.0
        %517 = vmatprep.subr.mxu0 0.0
        %518 = vmatpush1.xpose.msra.mxu0 0.0
        %519 = vmatprep.subr.mxu0 0.0
        %520 = vmatpush1.xpose.msra.mxu0 0.0
        %521 = vmatprep.subr.mxu0 0.0
        %522 = vmatpush1.xpose.msra.mxu0 0.0
        %523 = vmatprep.subr.mxu0 0.0
        %524 = vmatpush1.xpose.msra.mxu0 0.0
        %525 = vmatprep.subr.mxu0 0.0
        %526 = vmatpush1.xpose.msra.mxu0 0.0
        %527 = vmatprep.subr.mxu0 0.0
        %528 = vmatpush1.xpose.msra.mxu0 0.0
        %529 = vmatprep.subr.mxu0 0.0
        %530 = vmatpush1.xpose.msra.mxu0 0.0
        %531 = vmatprep.subr.mxu0 0.0
        %532 = vmatpush1.xpose.msra.mxu0 0.0
        %533 = vmatprep.subr.mxu0 0.0
        %534 = vmatpush1.xpose.msra.mxu0 0.0
        %535 = vmatprep.mubr.f32.mxu0 0.0
        %536 = vmatmul.mubr.f32.gmra.mrb[0].mxu0 %v439
        %v537 = vpop.f32.mrb[0].mxu0
        %v538 = vadd.f32 0.0, %v537
        %v539 = vpop.f32.mrb[0].mxu0
        %540 = vmatprep.mubr.f32.mxu0 0.0
        %541 = vmatmul.mubr.f32.gmra.mrb[0].mxu0 %v440
        %v542 = vpop.f32.mrb[0].mxu0
        %v543 = vadd.f32 0.0, %v542
        %v544 = vpop.f32.mrb[0].mxu0
        %545 = vmatprep.mubr.f32.mxu0 0.0
        %546 = vmatmul.mubr.f32.gmra.mrb[0].mxu0 %v441
        %v547 = vpop.f32.mrb[0].mxu0
        %v548 = vadd.f32 0.0, %v547
        %v549 = vpop.f32.mrb[0].mxu0
        %550 = vmatprep.mubr.f32.mxu0 0.0
        %551 = vmatmul.mubr.f32.gmra.mrb[0].mxu0 %v442
        %v552 = vpop.f32.mrb[0].mxu0
        %v553 = vadd.f32 0.0, %v552
        %v554 = vpop.f32.mrb[0].mxu0
        %555 = vmatprep.mubr.f32.mxu0 0.0
        %556 = vmatmul.mubr.f32.gmra.mrb[0].mxu0 %v443
        %v557 = vpop.f32.mrb[0].mxu0
        %v558 = vadd.f32 0.0, %v557
        %v559 = vpop.f32.mrb[0].mxu0
        %560 = vmatprep.mubr.f32.mxu0 0.0
        %561 = vmatmul.mubr.f32.gmra.mrb[0].mxu0 %v444
        %v562 = vpop.f32.mrb[0].mxu0
        %v563 = vadd.f32 0.0, %v562
        %v564 = vpop.f32.mrb[0].mxu0
        %565 = vmatprep.mubr.f32.mxu0 0.0
        %566 = vmatmul.mubr.f32.gmra.mrb[0].mxu0 %v445
        %v567 = vpop.f32.mrb[0].mxu0
        %v568 = vadd.f32 0.0, %v567
        %v569 = vpop.f32.mrb[0].mxu0
        %570 = vmatprep.mubr.f32.mxu0 0.0
        %571 = vmatmul.mubr.f32.gmra.mrb[0].mxu0 %v446
        %v572 = vpop.f32.mrb[0].mxu0
        %v573 = vadd.f32 0.0, %v572
        %v574 = vpop.f32.mrb[0].mxu0
        %575 = vmatprep.mubr.f32.mxu0 0.0
        %576 = vmatmul.mubr.f32.gmra.mrb[0].mxu0 %v447
        %v577 = vpop.f32.mrb[0].mxu0
        %v578 = vadd.f32 0.0, %v577
        %v579 = vpop.f32.mrb[0].mxu0
        %580 = vmatprep.mubr.f32.mxu0 0.0
        %581 = vmatmul.mubr.f32.gmra.mrb[0].mxu0 %v448
        %v582 = vpop.f32.mrb[0].mxu0
        %v583 = vadd.f32 0.0, %v582
        %v584 = vpop.f32.mrb[0].mxu0
        %585 = vmatprep.mubr.f32.mxu0 0.0
        %586 = vmatmul.mubr.f32.gmra.mrb[0].mxu0 %v449
        %v587 = vpop.f32.mrb[0].mxu0
        %v588 = vadd.f32 0.0, %v587
        %v589 = vpop.f32.mrb[0].mxu0
        %590 = vmatprep.mubr.f32.mxu0 0.0
        %591 = vmatmul.mubr.f32.gmra.mrb[0].mxu0 %v450
        %v592 = vpop.f32.mrb[0].mxu0
        %v593 = vadd.f32 0.0, %v592
        %v594 = vpop.f32.mrb[0].mxu0
        %595 = vmatprep.mubr.f32.mxu0 0.0
        %596 = vmatmul.mubr.f32.gmra.mrb[0].mxu0 %v451
        %v597 = vpop.f32.mrb[0].mxu0
        %v598 = vadd.f32 0.0, %v597
        %v599 = vpop.f32.mrb[0].mxu0
        %600 = vmatprep.mubr.f32.mxu0 0.0
        %601 = vmatmul.mubr.f32.gmra.mrb[0].mxu0 %v452
        %v602 = vpop.f32.mrb[0].mxu0
        %v603 = vadd.f32 0.0, %v602
        %v604 = vpop.f32.mrb[0].mxu0
        %605 = vmatprep.mubr.f32.mxu0 0.0
        %606 = vmatmul.mubr.f32.gmra.mrb[0].mxu0 %v453
        %v607 = vpop.f32.mrb[0].mxu0
        %v608 = vadd.f32 0.0, %v607
        %v609 = vpop.f32.mrb[0].mxu0
        %610 = vmatprep.mubr.f32.mxu0 0.0
        %611 = vmatmul.mubr.f32.gmra.mrb[0].mxu0 %v454
        %v612 = vpop.f32.mrb[0].mxu0
        %v613 = vadd.f32 0.0, %v612
        %v614 = vpop.f32.mrb[0].mxu0
        %615 = vdwg.mxu0
        %v616 = vtanh.pop %v538
        %v617 = vtanh.pop %v543
        %v618 = vtanh.pop %v548
        %v619 = vtanh.pop %v553
        %v620 = vtanh.pop %v558
        %v621 = vtanh.pop %v563
        %v622 = vtanh.pop %v568
        %v623 = vtanh.pop %v573
        %v624 = vtanh.pop %v578
        %v625 = vtanh.pop %v583
        %v626 = vtanh.pop %v588
        %v627 = vtanh.pop %v593
        %v628 = vtanh.pop %v598
        %v629 = vtanh.pop %v603
        %v630 = vtanh.pop %v608
        %v631 = vtanh.pop %v613
        %v632 = vld [vmem:[#allocation8] sm:$0xff]
        %v633 = vld [vmem:[#allocation8 + $0x8] sm:$0xff]
        %v634 = vld [vmem:[#allocation8 + $0x10] sm:$0xff]
        %v635 = vld [vmem:[#allocation8 + $0x18] sm:$0xff]
        %v636 = vld [vmem:[#allocation8 + $0x20] sm:$0xff]
        %v637 = vld [vmem:[#allocation8 + $0x28] sm:$0xff]
        %v638 = vld [vmem:[#allocation8 + $0x30] sm:$0xff]
        %v639 = vld [vmem:[#allocation8 + $0x38] sm:$0xff]
        %v640 = vld [vmem:[#allocation8 + $0x40] sm:$0xff]
        %v641 = vld [vmem:[#allocation8 + $0x48] sm:$0xff]
        %v642 = vld [vmem:[#allocation8 + $0x50] sm:$0xff]
        %v643 = vld [vmem:[#allocation8 + $0x58] sm:$0xff]
        %v644 = vld [vmem:[#allocation8 + $0x60] sm:$0xff]
        %v645 = vld [vmem:[#allocation8 + $0x68] sm:$0xff]
        %v646 = vld [vmem:[#allocation8 + $0x70] sm:$0xff]
        %v647 = vld [vmem:[#allocation8 + $0x78] sm:$0xff]
        %648 = vmatprep.subr.mxu0 0.0
        %649 = vmatpush1.xpose.msra.mxu0 %v632
        %650 = vmatprep.subr.mxu0 0.0
        %651 = vmatpush1.xpose.msra.mxu0 %v633
        %652 = vmatprep.subr.mxu0 0.0
        %653 = vmatpush1.xpose.msra.mxu0 %v634
        %654 = vmatprep.subr.mxu0 0.0
        %655 = vmatpush1.xpose.msra.mxu0 %v635
        %656 = vmatprep.subr.mxu0 0.0
        %657 = vmatpush1.xpose.msra.mxu0 %v636
        %658 = vmatprep.subr.mxu0 0.0
        %659 = vmatpush1.xpose.msra.mxu0 %v637
        %660 = vmatprep.subr.mxu0 0.0
        %661 = vmatpush1.xpose.msra.mxu0 %v638
        %662 = vmatprep.subr.mxu0 0.0
        %663 = vmatpush1.xpose.msra.mxu0 %v639
        %664 = vmatprep.subr.mxu0 0.0
        %665 = vmatpush1.xpose.msra.mxu0 %v640
        %666 = vmatprep.subr.mxu0 0.0
        %667 = vmatpush1.xpose.msra.mxu0 %v641
        %668 = vmatprep.subr.mxu0 0.0
        %669 = vmatpush1.xpose.msra.mxu0 %v642
        %670 = vmatprep.subr.mxu0 0.0
        %671 = vmatpush1.xpose.msra.mxu0 %v643
        %672 = vmatprep.subr.mxu0 0.0
        %673 = vmatpush1.xpose.msra.mxu0 %v644
        %674 = vmatprep.subr.mxu0 0.0
        %675 = vmatpush1.xpose.msra.mxu0 %v645
        %676 = vmatprep.subr.mxu0 0.0
        %677 = vmatpush1.xpose.msra.mxu0 %v646
        %678 = vmatprep.subr.mxu0 0.0
        %679 = vmatpush1.xpose.msra.mxu0 %v647
        %680 = vmatprep.subr.mxu0 0.0
        %681 = vmatpush1.xpose.msra.mxu0 0.0
        %682 = vmatprep.subr.mxu0 0.0
        %683 = vmatpush1.xpose.msra.mxu0 0.0
        %684 = vmatprep.subr.mxu0 0.0
        %685 = vmatpush1.xpose.msra.mxu0 0.0
        %686 = vmatprep.subr.mxu0 0.0
        %687 = vmatpush1.xpose.msra.mxu0 0.0
        %688 = vmatprep.subr.mxu0 0.0
        %689 = vmatpush1.xpose.msra.mxu0 0.0
        %690 = vmatprep.subr.mxu0 0.0
        %691 = vmatpush1.xpose.msra.mxu0 0.0
        %692 = vmatprep.subr.mxu0 0.0
        %693 = vmatpush1.xpose.msra.mxu0 0.0
        %694 = vmatprep.subr.mxu0 0.0
        %695 = vmatpush1.xpose.msra.mxu0 0.0
        %696 = vmatprep.subr.mxu0 0.0
        %697 = vmatpush1.xpose.msra.mxu0 0.0
        %698 = vmatprep.subr.mxu0 0.0
        %699 = vmatpush1.xpose.msra.mxu0 0.0
        %700 = vmatprep.subr.mxu0 0.0
        %701 = vmatpush1.xpose.msra.mxu0 0.0
        %702 = vmatprep.subr.mxu0 0.0
        %703 = vmatpush1.xpose.msra.mxu0 0.0
        %704 = vmatprep.subr.mxu0 0.0
        %705 = vmatpush1.xpose.msra.mxu0 0.0
        %706 = vmatprep.subr.mxu0 0.0
        %707 = vmatpush1.xpose.msra.mxu0 0.0
        %708 = vmatprep.subr.mxu0 0.0
        %709 = vmatpush1.xpose.msra.mxu0 0.0
        %710 = vmatprep.subr.mxu0 0.0
        %711 = vmatpush1.xpose.msra.mxu0 0.0
        %712 = vmatprep.mubr.f32.mxu0 0.0
        %713 = vmatmul.mubr.f32.gmra.mrb[0].mxu0 %v616
        %v714 = vpop.f32.mrb[0].mxu0
        %v715 = vadd.f32 0.0, %v714
        %v716 = vpop.f32.mrb[0].mxu0
        %717 = vmatprep.mubr.f32.mxu0 0.0
        %718 = vmatmul.mubr.f32.gmra.mrb[0].mxu0 %v617
        %v719 = vpop.f32.mrb[0].mxu0
        %v720 = vadd.f32 0.0, %v719
        %v721 = vpop.f32.mrb[0].mxu0
        %722 = vmatprep.mubr.f32.mxu0 0.0
        %723 = vmatmul.mubr.f32.gmra.mrb[0].mxu0 %v618
        %v724 = vpop.f32.mrb[0].mxu0
        %v725 = vadd.f32 0.0, %v724
        %v726 = vpop.f32.mrb[0].mxu0
        %727 = vmatprep.mubr.f32.mxu0 0.0
        %728 = vmatmul.mubr.f32.gmra.mrb[0].mxu0 %v619
        %v729 = vpop.f32.mrb[0].mxu0
        %v730 = vadd.f32 0.0, %v729
        %v731 = vpop.f32.mrb[0].mxu0
        %732 = vmatprep.mubr.f32.mxu0 0.0
        %733 = vmatmul.mubr.f32.gmra.mrb[0].mxu0 %v620
        %v734 = vpop.f32.mrb[0].mxu0
        %v735 = vadd.f32 0.0, %v734
        %v736 = vpop.f32.mrb[0].mxu0
        %737 = vmatprep.mubr.f32.mxu0 0.0
        %738 = vmatmul.mubr.f32.gmra.mrb[0].mxu0 %v621
        %v739 = vpop.f32.mrb[0].mxu0
        %v740 = vadd.f32 0.0, %v739
        %v741 = vpop.f32.mrb[0].mxu0
        %742 = vmatprep.mubr.f32.mxu0 0.0
        %743 = vmatmul.mubr.f32.gmra.mrb[0].mxu0 %v622
        %v744 = vpop.f32.mrb[0].mxu0
        %v745 = vadd.f32 0.0, %v744
        %v746 = vpop.f32.mrb[0].mxu0
        %747 = vmatprep.mubr.f32.mxu0 0.0
        %748 = vmatmul.mubr.f32.gmra.mrb[0].mxu0 %v623
        %v749 = vpop.f32.mrb[0].mxu0
        %v750 = vadd.f32 0.0, %v749
        %v751 = vpop.f32.mrb[0].mxu0
        %752 = vmatprep.mubr.f32.mxu0 0.0
        %753 = vmatmul.mubr.f32.gmra.mrb[0].mxu0 %v624
        %v754 = vpop.f32.mrb[0].mxu0
        %v755 = vadd.f32 0.0, %v754
        %v756 = vpop.f32.mrb[0].mxu0
        %757 = vmatprep.mubr.f32.mxu0 0.0
        %758 = vmatmul.mubr.f32.gmra.mrb[0].mxu0 %v625
        %v759 = vpop.f32.mrb[0].mxu0
        %v760 = vadd.f32 0.0, %v759
        %v761 = vpop.f32.mrb[0].mxu0
        %762 = vmatprep.mubr.f32.mxu0 0.0
        %763 = vmatmul.mubr.f32.gmra.mrb[0].mxu0 %v626
        %v764 = vpop.f32.mrb[0].mxu0
        %v765 = vadd.f32 0.0, %v764
        %v766 = vpop.f32.mrb[0].mxu0
        %767 = vmatprep.mubr.f32.mxu0 0.0
        %768 = vmatmul.mubr.f32.gmra.mrb[0].mxu0 %v627
        %v769 = vpop.f32.mrb[0].mxu0
        %v770 = vadd.f32 0.0, %v769
        %v771 = vpop.f32.mrb[0].mxu0
        %772 = vmatprep.mubr.f32.mxu0 0.0
        %773 = vmatmul.mubr.f32.gmra.mrb[0].mxu0 %v628
        %v774 = vpop.f32.mrb[0].mxu0
        %v775 = vadd.f32 0.0, %v774
        %v776 = vpop.f32.mrb[0].mxu0
        %777 = vmatprep.mubr.f32.mxu0 0.0
        %778 = vmatmul.mubr.f32.gmra.mrb[0].mxu0 %v629
        %v779 = vpop.f32.mrb[0].mxu0
        %v780 = vadd.f32 0.0, %v779
        %v781 = vpop.f32.mrb[0].mxu0
        %782 = vmatprep.mubr.f32.mxu0 0.0
        %783 = vmatmul.mubr.f32.gmra.mrb[0].mxu0 %v630
        %v784 = vpop.f32.mrb[0].mxu0
        %v785 = vadd.f32 0.0, %v784
        %v786 = vpop.f32.mrb[0].mxu0
        %787 = vmatprep.mubr.f32.mxu0 0.0
        %788 = vmatmul.mubr.f32.gmra.mrb[0].mxu0 %v631
        %v789 = vpop.f32.mrb[0].mxu0
        %v790 = vadd.f32 0.0, %v789
        %v791 = vpop.f32.mrb[0].mxu0
        %792 = vdwg.mxu0
        %793 = vst [vmem:[%s259] sm:$0xff] %v715
        %794 = vst [vmem:[%s259 + $0x8] sm:$0xff] %v720
        %795 = vst [vmem:[%s259 + $0x10] sm:$0xff] %v725
        %796 = vst [vmem:[%s259 + $0x18] sm:$0xff] %v730
        %797 = vst [vmem:[%s259 + $0x20] sm:$0xff] %v735
        %798 = vst [vmem:[%s259 + $0x28] sm:$0xff] %v740
        %799 = vst [vmem:[%s259 + $0x30] sm:$0xff] %v745
        %800 = vst [vmem:[%s259 + $0x38] sm:$0xff] %v750
        %801 = vst [vmem:[%s259 + $0x40] sm:$0xff] %v755
        %802 = vst [vmem:[%s259 + $0x48] sm:$0xff] %v760
        %803 = vst [vmem:[%s259 + $0x50] sm:$0xff] %v765
        %804 = vst [vmem:[%s259 + $0x58] sm:$0xff] %v770
        %805 = vst [vmem:[%s259 + $0x60] sm:$0xff] %v775
        %806 = vst [vmem:[%s259 + $0x68] sm:$0xff] %v780
        %807 = vst [vmem:[%s259 + $0x70] sm:$0xff] %v785
        %808 = vst [vmem:[%s259 + $0x78] sm:$0xff] %v790
        %s809 = sand.u32 %s120, 1
        %s810 = scalar_lea.sflag [#allocation4], %s809
        %s811 = sand.u32 %s120, 1
        %s812 = smul.addr %s811, 128
        %s813 = scalar_lea.vmem [#allocation10], %s812
        // Predicated region
        $region53: #{tpu_custom_call.1} parent=35 // pred_check
          %p814 = pneg %p130
        $region54: #{tpu_custom_call.1} parent=35 // pred_check_branch
          %816 = sbr.rel (%p814) target = $region56
        $region55: #{tpu_custom_call.1} parent=35 // pred_region
          %s817 = smul.u32 16, %s23
          %s819 = ssub.s32 2048, 2048
          %820 = vsyncadd %s810, %s819
          %s821 = smul.addr %s817, 128
          %s822 = scalar_lea.hbm %s4, %s821
          %s823 = sshll.u32 %s813, 4
          %s824 = int_to_ptr.vmem [resolvable:$true] %s823
          %829 = dma.vmem_to_hbm [thread:$0]  %s824, 2048, %s822, %s810, 128, 128, 8
        $region56: #{tpu_custom_call.1} parent=35 // pred_fallthru
          _
      $region36: #{tpu_custom_call.1} parent=5 // pred_fallthru
        _
      %p830 = scmp.le.s32.totalorder 2, %s18
      // Predicated region
      $region57: #{tpu_custom_call.1} parent=5 // pred_check
        %p831 = pneg %p830
      $region58: #{tpu_custom_call.1} parent=5 // pred_check_branch
        %833 = sbr.rel (%p831) target = $region60
      $region59: #{tpu_custom_call.1} parent=5 // pred_region
        %s834 = ssub.s32 %s18, 2
        // Predicated region
        $region61: #{tpu_custom_call.1} parent=59 // pred_check
          %p835 = pneg %p136
        $region62: #{tpu_custom_call.1} parent=59 // pred_check_branch
          %837 = sbr.rel (%p835) target = $region64
        $region63: #{tpu_custom_call.1} parent=59 // pred_region
          %s838 = sand.u32 %s121, 1
          %s839 = scalar_lea.sflag [#allocation4], %s838
          %s840 = sand.u32 %s121, 1
          %s841 = smul.addr %s840, 128
          %s842 = scalar_lea.vmem [#allocation10], %s841
          %843 = dma.done %s839, 2048
        $region64: #{tpu_custom_call.1} parent=59 // pred_fallthru
          _
      $region60: #{tpu_custom_call.1} parent=5 // pred_fallthru
        _
    $region6: #{tpu_custom_call.1} parent=1 // loop_footer
      %s22 = sadd.s32 1, %s18
    $region7: #{tpu_custom_call.1} parent=1 // loop_footer_branch
      %17 = sbr.rel target = $region3
    $region8: #{tpu_custom_call.1} parent=1 // loop_exit
      _
    %844 = vsyncpa [#allocation3], 1
    %s845 = scalar_lea.sflag [#allocation3], 1
    %846 = vsyncpa %s845, 1
    %847 = vsyncpa [#allocation6], 1
    %848 = vsyncpa [#allocation9], 1
    %849 = vsyncpa [#allocation4], 1
    %s850 = scalar_lea.sflag [#allocation4], 1
    %851 = vsyncpa %s850, 1

</llo_original>
